<compile_context>
chip_gen: v7x
topology: tpu7x:2x2x1
jax: 0.10.0
libtpu: 0.0.40
codegen_flags: <defaults>
</compile_context>

<pallas_src>
import jax
import jax.numpy as jnp
from jax.experimental import pallas as pl
from jax.experimental.pallas import tpu as pltpu


def _round_up(x: int, m: int) -> int:
    return ((x + m - 1) // m) * m


def _graph_embed_kernel_single_k(adj_ref, we_ref, out_ref):
    # Whole contraction (K) fits in one block: write the MXU result directly.
    out_ref[...] = jnp.dot(
        adj_ref[...], we_ref[...], preferred_element_type=jnp.float32
    ).astype(out_ref.dtype)


def _graph_embed_kernel_multi_k(adj_ref, we_ref, out_ref, acc_ref):
    # adj_ref: (tm, tk) tile of flattened (B*N, N) adjacency
    # we_ref:  (tk, td) tile of the embedding matrix
    # acc_ref: (tm, td) f32 accumulator, resident across the K grid axis
    @pl.when(pl.program_id(2) == 0)
    def _():
        acc_ref[...] = jnp.zeros_like(acc_ref)

    acc_ref[...] += jnp.dot(
        adj_ref[...], we_ref[...], preferred_element_type=jnp.float32
    )

    @pl.when(pl.program_id(2) == pl.num_programs(2) - 1)
    def _():
        out_ref[...] = acc_ref[...].astype(out_ref.dtype)


# Tile-size caps (f32): keeps double-buffered VMEM ~11 MiB worst case.
_TM_CAP = 512    # sublane axis of adj / out
_TK_CAP = 1024   # contraction axis (full-dim block if it fits)
_TK_TILE = 512   # tile size when K exceeds the cap (multiple of 128 and 8)
_TD_CAP = 512    # lane axis of W_E / out


def graph_embed(adj: jax.Array, W_E: jax.Array) -> jax.Array:
    """adj: [B, N, N], W_E: [N, D] -> [B, N, D]  (== adj @ W_E)"""
    B, N, N2 = adj.shape
    assert N2 == N, "adjacency must be square"
    Nw, D = W_E.shape
    assert Nw == N, "W_E rows must equal n_vertices"
    out_dtype = jnp.result_type(adj.dtype, W_E.dtype)

    # Fold batch into the matmul M dimension (reshape is free).
    M, K = B * N, N
    adj2 = adj.reshape(M, K)
    Wp = W_E

    # --- Tiling: full-dimension blocks when possible (no padding), otherwise
    # aligned tiles + zero padding (exact: zero rows/cols contribute nothing).
    if M <= _TM_CAP:
        tm, Mp = M, M
    else:
        tm = _TM_CAP
        Mp = _round_up(M, tm)

    if K <= _TK_CAP:
        tk, Kp = K, K
    else:
        tk = _TK_TILE
        Kp = _round_up(K, tk)

    if D <= _TD_CAP:
        td, Dp = D, D
    else:
        td = _TD_CAP
        Dp = _round_up(D, td)

    if (Mp, Kp) != (M, K):
        adj2 = jnp.pad(adj2, ((0, Mp - M), (0, Kp - K)))
    if (Kp, Dp) != (K, D):
        Wp = jnp.pad(W_E, ((0, Kp - K), (0, Dp - D)))

    gm, gd, gk = Mp // tm, Dp // td, Kp // tk

    cost = pl.CostEstimate(
        flops=2 * M * K * D,
        transcendentals=0,
        bytes_accessed=(
            adj.size * adj.dtype.itemsize
            + W_E.size * W_E.dtype.itemsize
            + M * D * jnp.dtype(out_dtype).itemsize
        ),
    )

    if gk == 1:
        # Fast path: whole contraction in one block -> no accumulator scratch.
        out_p = pl.pallas_call(
            _graph_embed_kernel_single_k,
            out_shape=jax.ShapeDtypeStruct((Mp, Dp), out_dtype),
            grid_spec=pltpu.PrefetchScalarGridSpec(
                num_scalar_prefetch=0,
                grid=(gm, gd),
                in_specs=[
                    pl.BlockSpec((tm, Kp), lambda i, j: (i, 0)),
                    pl.BlockSpec((Kp, td), lambda i, j: (0, j)),
                ],
                out_specs=pl.BlockSpec((tm, td), lambda i, j: (i, j)),
            ),
            compiler_params=pltpu.CompilerParams(
                dimension_semantics=("parallel", "parallel"),
            ),
            cost_estimate=cost,
        )(adj2, Wp)
    else:
        out_p = pl.pallas_call(
            _graph_embed_kernel_multi_k,
            out_shape=jax.ShapeDtypeStruct((Mp, Dp), out_dtype),
            grid_spec=pltpu.PrefetchScalarGridSpec(
                num_scalar_prefetch=0,
                grid=(gm, gd, gk),
                in_specs=[
                    pl.BlockSpec((tm, tk), lambda i, j, k: (i, k)),
                    pl.BlockSpec((tk, td), lambda i, j, k: (k, j)),
                ],
                out_specs=pl.BlockSpec((tm, td), lambda i, j, k: (i, j)),
                scratch_shapes=[pltpu.VMEM((tm, td), jnp.float32)],
            ),
            compiler_params=pltpu.CompilerParams(
                dimension_semantics=("parallel", "parallel", "arbitrary"),
            ),
            cost_estimate=cost,
        )(adj2, Wp)

    out = out_p
    if (Mp, Dp) != (M, D):
        out = out_p[:M, :D]
    return out.reshape(B, N, D)


if __name__ == "__main__":
    # Small shapes consistent with the module: batch=2, n_vertices=16, d_model=32.
    batch, n_vertices, d_model = 2, 16, 32

    key = jax.random.PRNGKey(0)
    k_adj, k_we = jax.random.split(key)

    # Symmetric 0/1 adjacency matrices (typical graph input), float32.
    a = jax.random.bernoulli(k_adj, p=0.3, shape=(batch, n_vertices, n_vertices))
    adj = jnp.triu(a.astype(jnp.float32), k=1)
    adj = adj + jnp.swapaxes(adj, -1, -2)

    # Deterministic synthetic W_E parameter (nn.Parameter(torch.empty(N, D)) shape).
    W_E = jax.random.normal(k_we, (n_vertices, d_model), dtype=jnp.float32) * 0.02

    out = graph_embed(adj, W_E)
    jax.block_until_ready(out)

    # Correctness check against plain-JAX reference of `input @ W_E`.
    ref = jnp.einsum("bij,jd->bid", adj, W_E)
    assert out.shape == (batch, n_vertices, d_model)
    assert jnp.allclose(out, ref, atol=1e-5, rtol=1e-5)

    print("KERNEL_OK")
</pallas_src>

<mosaic_0001>
module attributes {stable_mosaic.version = 11 : i64} {
  func.func @_graph_embed_kernel_single_k(%arg0: i32, %arg1: i32, %arg2: memref<32x16xf32, #tpu.memory_space<vmem>>, %arg3: memref<16x32xf32, #tpu.memory_space<vmem>>, %arg4: memref<32x32xf32, #tpu.memory_space<vmem>>) attributes {dimension_semantics = [#tpu.dimension_semantics<parallel>, #tpu.dimension_semantics<parallel>], iteration_bounds = array<i64: 1, 1>, scalar_prefetch = 0 : i64, scratch_operands = 0 : i64, tpu.core_type = #tpu.core_type<tc>, window_params = [{transform_indices = @transform_0, window_bounds = array<i64: 32, 16>}, {transform_indices = @transform_1, window_bounds = array<i64: 16, 32>}, {transform_indices = @transform_2, window_bounds = array<i64: 32, 32>}]} {
    %c0 = arith.constant 0 : index
    %c0_0 = arith.constant 0 : index
    %0 = vector.load %arg2[%c0, %c0_0] : memref<32x16xf32, #tpu.memory_space<vmem>>, vector<32x16xf32>
    %c0_1 = arith.constant 0 : index
    %c0_2 = arith.constant 0 : index
    %1 = vector.load %arg3[%c0_1, %c0_2] : memref<16x32xf32, #tpu.memory_space<vmem>>, vector<16x32xf32>
    %cst = arith.constant dense<0.000000e+00> : vector<32x32xf32>
    %2 = tpu.matmul %0, %1, %cst {dimension_numbers = #tpu.dot_dimension_numbers<[1], [0], [0], [1], [0, 0, 1, 1], [], []>} : vector<32x16xf32>, vector<16x32xf32>, vector<32x32xf32> -> vector<32x32xf32>
    %c0_3 = arith.constant 0 : index
    %c0_4 = arith.constant 0 : index
    %3 = vector.load %arg4[%c0_3, %c0_4] : memref<32x32xf32, #tpu.memory_space<vmem>>, vector<32x32xf32>
    tpu.vector_store %arg4[%c0_3, %c0_4], %2 {strides = array<i32>} : memref<32x32xf32, #tpu.memory_space<vmem>>, vector<32x32xf32>,
    return
  }
  func.func @transform_0(%arg0: i32, %arg1: i32) -> (i32, i32) {
    %c0_i32 = arith.constant 0 : i32
    %c0_i32_0 = arith.constant 0 : i32
    return %arg0, %c0_i32 : i32, i32
  }
  func.func @transform_1(%arg0: i32, %arg1: i32) -> (i32, i32) {
    %c0_i32 = arith.constant 0 : i32
    %c0_i32_0 = arith.constant 0 : i32
    return %c0_i32, %arg1 : i32, i32
  }
  func.func @transform_2(%arg0: i32, %arg1: i32) -> (i32, i32) {
    %c0_i32 = arith.constant 0 : i32
    return %arg0, %arg1 : i32, i32
  }
}

</mosaic_0001>

<llo_original>
// kernel: tpu_custom_call.1
$region0: #{tpu_custom_call.1}
  #allocation0 [shape = 'u32[]', space=smem, size = 0x4, offset = 0x4, fixed_abs, tag = 'smem constant byte address 0x4 - core index']
  #allocation1 [shape = 'u32[144,128]{1,0:T(1,128)}', space=vmem, size = 0x12000, scoped, tag = 'internal scratch']
  %s0 = inlined_call_operand.vmem [shape: f32[32,16], index: 0, kind: input, shape index: {}]
  %s1 = inlined_call_operand.vmem [shape: f32[16,32], index: 1, kind: input, shape index: {}]
  %s2 = inlined_call_operand.hbm [shape: f32[32,32], index: 2, kind: output, shape index: {}]
  %s3 = sld [smem:[#allocation0]]
  $region18: #{tpu_custom_call.1} parent=0
    _
  %s5 = ssub.s32 1, %s3
  %s6 = scalar_select 0, %s5, %s3
  $region1: #{tpu_custom_call.1} parent=0
    #allocation2 [shape = 'u8[16384]{0}', space=vmem, size = 0x4000, scoped, tag = 'output window, operand 0, single buffered']
    #allocation3 [shape = 's32[1]{0}', space=sflag, size = 0x4, scoped, tag = 'scoped memory for tpu_custom_call.1']
    %7 = vsyncpa [#allocation3], 0
    // Predicated region
    $region2: #{tpu_custom_call.1} parent=1 // pred_check
      _
    $region3: #{tpu_custom_call.1} parent=1 // pred_check_branch
      %9 = sbr.rel (0) target = $region5
    $region4: #{tpu_custom_call.1} parent=1 // pred_region
      _
    $region5: #{tpu_custom_call.1} parent=1 // pred_fallthru
      _
    // Predicated region
    $region6: #{tpu_custom_call.1} parent=1 // pred_check
      _
    $region7: #{tpu_custom_call.1} parent=1 // pred_check_branch
      %11 = sbr.rel (0) target = $region9
    $region8: #{tpu_custom_call.1} parent=1 // pred_region
      _
    $region9: #{tpu_custom_call.1} parent=1 // pred_fallthru
      _
    %v12 = vld [vmem:[%s0] sm:$0xff]
    %v13 = vld [vmem:[%s0 + $0x8] sm:$0xff]
    %v14 = vld [vmem:[%s0 + $0x10] sm:$0xff]
    %v15 = vld [vmem:[%s0 + $0x18] sm:$0xff]
    %v16 = vld [vmem:[%s1] sm:$0xff]
    %v17 = vld [vmem:[%s1 + $0x8] sm:$0xff]
    %vm18 = vcmask 130048
    %v20 = vsel %vm18, %v12, 0
    %v23 = vsel %vm18, %v13, 0
    %v26 = vsel %vm18, %v14, 0
    %v29 = vsel %vm18, %v15, 0
    %31 = vmatprep.subr.mxu0 0.0
    %32 = vmatpush1.msra.mxu0 %v16
    %33 = vmatprep.subr.mxu0 0.0
    %34 = vmatpush1.msra.mxu0 %v17
    %35 = vmatprep.subr.mxu0 0.0
    %36 = vmatpush1.msra.mxu0 0.0
    %37 = vmatprep.subr.mxu0 0.0
    %38 = vmatpush1.msra.mxu0 0.0
    %39 = vmatprep.subr.mxu0 0.0
    %40 = vmatpush1.msra.mxu0 0.0
    %41 = vmatprep.subr.mxu0 0.0
    %42 = vmatpush1.msra.mxu0 0.0
    %43 = vmatprep.subr.mxu0 0.0
    %44 = vmatpush1.msra.mxu0 0.0
    %45 = vmatprep.subr.mxu0 0.0
    %46 = vmatpush1.msra.mxu0 0.0
    %47 = vmatprep.subr.mxu0 0.0
    %48 = vmatpush1.msra.mxu0 0.0
    %49 = vmatprep.subr.mxu0 0.0
    %50 = vmatpush1.msra.mxu0 0.0
    %51 = vmatprep.subr.mxu0 0.0
    %52 = vmatpush1.msra.mxu0 0.0
    %53 = vmatprep.subr.mxu0 0.0
    %54 = vmatpush1.msra.mxu0 0.0
    %55 = vmatprep.subr.mxu0 0.0
    %56 = vmatpush1.msra.mxu0 0.0
    %57 = vmatprep.subr.mxu0 0.0
    %58 = vmatpush1.msra.mxu0 0.0
    %59 = vmatprep.subr.mxu0 0.0
    %60 = vmatpush1.msra.mxu0 0.0
    %61 = vmatprep.subr.mxu0 0.0
    %62 = vmatpush1.msra.mxu0 0.0
    %63 = vmatprep.subr.mxu0 0.0
    %64 = vmatpush1.msra.mxu0 0.0
    %65 = vmatprep.subr.mxu0 0.0
    %66 = vmatpush1.msra.mxu0 0.0
    %67 = vmatprep.subr.mxu0 0.0
    %68 = vmatpush1.msra.mxu0 0.0
    %69 = vmatprep.subr.mxu0 0.0
    %70 = vmatpush1.msra.mxu0 0.0
    %71 = vmatprep.subr.mxu0 0.0
    %72 = vmatpush1.msra.mxu0 0.0
    %73 = vmatprep.subr.mxu0 0.0
    %74 = vmatpush1.msra.mxu0 0.0
    %75 = vmatprep.subr.mxu0 0.0
    %76 = vmatpush1.msra.mxu0 0.0
    %77 = vmatprep.subr.mxu0 0.0
    %78 = vmatpush1.msra.mxu0 0.0
    %79 = vmatprep.subr.mxu0 0.0
    %80 = vmatpush1.msra.mxu0 0.0
    %81 = vmatprep.subr.mxu0 0.0
    %82 = vmatpush1.msra.mxu0 0.0
    %83 = vmatprep.subr.mxu0 0.0
    %84 = vmatpush1.msra.mxu0 0.0
    %85 = vmatprep.subr.mxu0 0.0
    %86 = vmatpush1.msra.mxu0 0.0
    %87 = vmatprep.subr.mxu0 0.0
    %88 = vmatpush1.msra.mxu0 0.0
    %89 = vmatprep.subr.mxu0 0.0
    %90 = vmatpush1.msra.mxu0 0.0
    %91 = vmatprep.subr.mxu0 0.0
    %92 = vmatpush1.msra.mxu0 0.0
    %93 = vmatprep.subr.mxu0 0.0
    %94 = vmatpush1.msra.mxu0 0.0
    %95 = vmatprep.mubr.f32.mxu0 0.0
    %96 = vmatmul.mubr.f32.gmra.mrb[0].mxu0 %v20
    %v97 = vpop.f32.mrb[0].mxu0
    %v98 = vadd.f32 0.0, %v97
    %v99 = vpop.f32.mrb[0].mxu0
    %100 = vmatprep.mubr.f32.mxu0 0.0
    %101 = vmatmul.mubr.f32.gmra.mrb[0].mxu0 %v23
    %v102 = vpop.f32.mrb[0].mxu0
    %v103 = vadd.f32 0.0, %v102
    %v104 = vpop.f32.mrb[0].mxu0
    %105 = vmatprep.mubr.f32.mxu0 0.0
    %106 = vmatmul.mubr.f32.gmra.mrb[0].mxu0 %v26
    %v107 = vpop.f32.mrb[0].mxu0
    %v108 = vadd.f32 0.0, %v107
    %v109 = vpop.f32.mrb[0].mxu0
    %110 = vmatprep.mubr.f32.mxu0 0.0
    %111 = vmatmul.mubr.f32.gmra.mrb[0].mxu0 %v29
    %v112 = vpop.f32.mrb[0].mxu0
    %v113 = vadd.f32 0.0, %v112
    %v114 = vpop.f32.mrb[0].mxu0
    %115 = vdwg.mxu0
    %vm116 = vcmask 261120
    %117 = vst.msk [vmem:[#allocation2] sm:$0xff] %vm116, %v98
    %118 = vst.msk [vmem:[#allocation2 + $0x8] sm:$0xff] %vm116, %v103
    %119 = vst.msk [vmem:[#allocation2 + $0x10] sm:$0xff] %vm116, %v108
    %120 = vst.msk [vmem:[#allocation2 + $0x18] sm:$0xff] %vm116, %v113
    // Predicated region
    $region10: #{tpu_custom_call.1} parent=1 // pred_check
      _
    $region11: #{tpu_custom_call.1} parent=1 // pred_check_branch
      %122 = sbr.rel (0) target = $region13
    $region12: #{tpu_custom_call.1} parent=1 // pred_region
      %s124 = ssub.s32 512, 512
      %125 = vsyncadd [#allocation3], %s124
      %s126 = sshll.u32 [#allocation2], 4
      %s127 = int_to_ptr.vmem [resolvable:$true] %s126
      %132 = dma.vmem_to_hbm [thread:$0]  %s127, 512, %s2, [#allocation3], 128, 128, 8
    $region13: #{tpu_custom_call.1} parent=1 // pred_fallthru
      _
    // Predicated region
    $region14: #{tpu_custom_call.1} parent=1 // pred_check
      _
    $region15: #{tpu_custom_call.1} parent=1 // pred_check_branch
      %134 = sbr.rel (0) target = $region17
    $region16: #{tpu_custom_call.1} parent=1 // pred_region
      %135 = dma.done [#allocation3], 512
    $region17: #{tpu_custom_call.1} parent=1 // pred_fallthru
      _
    %136 = vsyncpa [#allocation3], 1

</llo_original>
